<compile_context>
chip_gen: v7x
topology: tpu7x:2x2x1
jax: 0.10.0
libtpu: 0.0.40
codegen_flags: <defaults>
</compile_context>

<pallas_src>
import jax
import jax.numpy as jnp
from jax.experimental import pallas as pl
from jax.experimental.pallas import tpu as pltpu

_LANE = 128
_SUBLANE = 8


def _round_up(x, m):
    return -(-x // m) * m


def _default_n_super():
    # v7x has 2 TensorCores/chip: shard the HBM-bound stream across both via
    # the leading "parallel" grid axis. Single-TC chips (v5e/v6e) keep 1.
    try:
        kind = jax.devices()[0].device_kind.lower()
    except Exception:
        return 1
    return 2 if "v7" in kind else 1


def _default_block_bytes():
    # Target bytes for ONE (B*C, T) input block (the kernel DMAs 2 of these per
    # step, double-buffered => ~4x this in VMEM).  Sized per generation so the
    # ~0.35us/step pipeline overhead stays <~5% of the per-step DMA time while
    # staying well under physical VMEM (incl. v7x's 64 MiB).
    try:
        kind = jax.devices()[0].device_kind.lower()
    except Exception:
        return 4 << 20
    if "v7" in kind:
        return 8 << 20
    if "v5" in kind and ("lite" in kind or "v5e" in kind):
        return 3 << 20
    return 6 << 20  # v6e and everything else


def _choose_tiling(R, HW, itemsize, n_super, target_block_bytes):
    """Return (n_super, T, tiles_per_super); T is lane-dense or the full HW."""
    r_pad = _round_up(R, _SUBLANE)
    t_cap = max(_LANE,
                (target_block_bytes // (itemsize * r_pad)) // _LANE * _LANE)
    if n_super <= 1 or HW <= 2 * _LANE:
        # Single super-chunk: either one full-extent tile (no mask, no padding)
        # or a lane-dense tiling with an in-kernel masked tail.
        if HW <= t_cap:
            return 1, HW, 1
        return 1, t_cap, pl.cdiv(HW, t_cap)
    # Multi-TensorCore split: also split problems that would fit a single tile
    # so the second core is not idle.
    T = min(t_cap, _round_up(pl.cdiv(HW, n_super), _LANE))
    n_valid = pl.cdiv(HW, T)
    tiles_per_super = pl.cdiv(n_valid, n_super)
    return n_super, T, tiles_per_super


def _make_dice_kernel(T, HW, tiles_per_super, needs_mask):
    def kernel(x_ref, t_ref, xt_out, tt_out, xx_out, xt_acc, tt_acc, xx_acc):
        s = pl.program_id(1)

        @pl.when(s == 0)
        def _():
            xt_acc[...] = jnp.zeros_like(xt_acc)
            tt_acc[...] = jnp.zeros_like(tt_acc)
            xx_acc[...] = jnp.zeros_like(xx_acc)

        x = x_ref[...].astype(jnp.float32)
        t = t_ref[...].astype(jnp.float32)

        if needs_mask:
            # Exact tail handling without padding: zero out lanes past HW.
            # (jnp.where, not mask-multiply, so garbage in the partial block's
            #  out-of-bounds region can never propagate.)
            linear_tile = pl.program_id(0) * tiles_per_super + s
            base = linear_tile * T
            lane = jax.lax.broadcasted_iota(jnp.int32, x.shape, 1)
            valid = (base + lane) < HW
            zero = jnp.zeros_like(x)
            x = jnp.where(valid, x, zero)
            t = jnp.where(valid, t, zero)

        # Pure-VPU products; one cross-lane (XLU) reduce per product per step,
        # which hides under the DMA of the next tile.  Accumulators are tiny
        # (R, 1) f32 so VMEM does not scale with T.
        xt_acc[...] += jnp.sum(x * t, axis=-1, keepdims=True)
        tt_acc[...] += jnp.sum(t * t, axis=-1, keepdims=True)
        xx_acc[...] += jnp.sum(x * x, axis=-1, keepdims=True)

        @pl.when(s == pl.num_programs(1) - 1)
        def _():
            xt_out[0] = xt_acc[...]
            tt_out[0] = tt_acc[...]
            xx_out[0] = xx_acc[...]

    return kernel


def soft_dice_loss(inputs, target, n_classes, *, n_super=None,
                   target_block_bytes=None):
    """Pallas implementation of softDiceLoss.forward.

    inputs, target: (B, C, *spatial); returns scalar float32 loss = mean over
    classes of (1 - (2*sum(x*t)+eps)/(sum(x*x)+sum(t*t)+eps)), smooth=1e-10.
    """
    assert inputs.shape == target.shape, "predict & target shape do not match"
    B, C = inputs.shape[0], inputs.shape[1]
    assert C == n_classes

    HW = 1
    for d in inputs.shape[2:]:
        HW *= d
    R = B * C

    # Free reshapes (contiguous): spatial extent -> lane axis, (B,C) -> sublanes.
    x = inputs.reshape(R, HW)
    t = target.reshape(R, HW)

    if n_super is None:
        n_super = _default_n_super()
    if target_block_bytes is None:
        target_block_bytes = _default_block_bytes()

    itemsize = max(jnp.dtype(inputs.dtype).itemsize,
                   jnp.dtype(target.dtype).itemsize)
    n_super, T, tiles_per_super = _choose_tiling(
        R, HW, itemsize, n_super, target_block_bytes)
    n_grid_tiles = n_super * tiles_per_super
    n_valid = pl.cdiv(HW, T)
    needs_mask = (n_grid_tiles * T != HW)

    if n_grid_tiles > n_valid:
        # Uneven super-chunk split: redundant trailing steps clamp to the last
        # valid tile (in-bounds DMA) and are fully zeroed by the in-kernel mask.
        in_index = lambda p, s: (0, jnp.minimum(p * tiles_per_super + s,
                                                n_valid - 1))
    else:
        in_index = lambda p, s: (0, p * tiles_per_super + s)

    in_spec = pl.BlockSpec((R, T), in_index)
    out_spec = pl.BlockSpec((1, R, 1), lambda p, s: (p, 0, 0))
    out_sds = jax.ShapeDtypeStruct((n_super, R, 1), jnp.float32)

    # Real VMEM footprint: 2 inputs x 2 pipeline buffers + tiny accumulators /
    # outputs, plus slack; pass an explicit limit (v5e default scoped limit is
    # only 16 MiB) while keeping headroom under v7x's 64 MiB physical VMEM.
    r_pad = _round_up(R, _SUBLANE)
    in_block_bytes = r_pad * T * itemsize
    vmem_bytes = (2 * 2 * in_block_bytes
                  + 3 * r_pad * _LANE * 4
                  + 3 * 2 * _SUBLANE * _LANE * 4
                  + (2 << 20))
    vmem_limit = int(min(max(vmem_bytes, 16 << 20), 48 << 20))

    kernel = _make_dice_kernel(T, HW, tiles_per_super, needs_mask)

    xt, tt, xx = pl.pallas_call(
        kernel,
        out_shape=(out_sds, out_sds, out_sds),
        grid_spec=pltpu.PrefetchScalarGridSpec(
            num_scalar_prefetch=0,
            grid=(n_super, tiles_per_super),
            in_specs=[in_spec, in_spec],
            out_specs=(out_spec, out_spec, out_spec),
            scratch_shapes=[pltpu.VMEM((R, 1), jnp.float32)] * 3,
        ),
        compiler_params=pltpu.CompilerParams(
            dimension_semantics=("parallel", "arbitrary"),
            vmem_limit_bytes=vmem_limit,
        ),
    )(x, t)

    # Trivial glue: regroup rows back to (B, C), sum over super-chunks & batch.
    intersect = jnp.sum(xt.reshape(n_super, B, C), axis=(0, 1))   # (C,)
    y_sum = jnp.sum(tt.reshape(n_super, B, C), axis=(0, 1))       # (C,)
    z_sum = jnp.sum(xx.reshape(n_super, B, C), axis=(0, 1))       # (C,)

    smooth = jnp.float32(1e-10)
    dice = 1.0 - (2.0 * intersect + smooth) / (z_sum + y_sum + smooth)
    # TODO(synk): the PyTorch module's host-side `class_wise_dice` (.item())
    # bookkeeping is not part of the returned value; omitted.
    return jnp.sum(dice) / jnp.float32(n_classes)


def _ref_loss(inputs, target, n_classes):
    smooth = 1e-10
    total = 0.0
    for i in range(n_classes):
        xc = inputs[:, i]
        tc = target[:, i]
        inter = jnp.sum(xc * tc)
        y = jnp.sum(tc * tc)
        z = jnp.sum(xc * xc)
        total += 1.0 - (2.0 * inter + smooth) / (z + y + smooth)
    return total / n_classes


def _make_case(key, B, C, H, W):
    k1, k2 = jax.random.split(key)
    inp = jax.nn.softmax(
        jax.random.normal(k1, (B, C, H, W), dtype=jnp.float32), axis=1)
    labels = jax.random.randint(k2, (B, H, W), 0, C)
    tgt = jax.nn.one_hot(labels, C, dtype=jnp.float32).transpose(0, 3, 1, 2)
    return inp, tgt


if __name__ == "__main__":
    key = jax.random.PRNGKey(0)
    k1, k2, k3 = jax.random.split(key, 3)

    # --- 1) Main demo shape: single lane-dense tile, no masking ---
    B, C, H, W = 2, 4, 16, 16
    inputs, target = _make_case(k1, B, C, H, W)
    loss = jax.block_until_ready(soft_dice_loss(inputs, target, n_classes=C))
    ref = _ref_loss(inputs, target, C)
    assert jnp.allclose(loss, ref, rtol=1e-5, atol=1e-6), (loss, ref)

    # --- 2) Tiled + ragged tail (in-kernel mask) + 2 super-chunks ---
    B2, C2, H2, W2 = 2, 4, 24, 40   # HW = 960 (not a multiple of 256)
    inputs2, target2 = _make_case(k2, B2, C2, H2, W2)
    loss2 = jax.block_until_ready(
        soft_dice_loss(inputs2, target2, n_classes=C2, n_super=2,
                       target_block_bytes=4 * (B2 * C2) * 256))  # forces T=256
    ref2 = _ref_loss(inputs2, target2, C2)
    assert jnp.allclose(loss2, ref2, rtol=1e-5, atol=1e-6), (loss2, ref2)

    # --- 3) Uneven super-chunk split: clamped + fully-masked redundant step ---
    B3, C3, H3, W3 = 2, 4, 24, 32   # HW = 768 -> 3 valid tiles over a 2x2 grid
    inputs3, target3 = _make_case(k3, B3, C3, H3, W3)
    loss3 = jax.block_until_ready(
        soft_dice_loss(inputs3, target3, n_classes=C3, n_super=2,
                       target_block_bytes=4 * (B3 * C3) * 256))
    ref3 = _ref_loss(inputs3, target3, C3)
    assert jnp.allclose(loss3, ref3, rtol=1e-5, atol=1e-6), (loss3, ref3)

    print("KERNEL_OK")
</pallas_src>

<mosaic_0001>
module attributes {stable_mosaic.version = 11 : i64} {
  func.func @kernel(%arg0: i32, %arg1: i32, %arg2: memref<8x256xf32, #tpu.memory_space<vmem>>, %arg3: memref<8x256xf32, #tpu.memory_space<vmem>>, %arg4: memref<1x8x1xf32, #tpu.memory_space<vmem>>, %arg5: memref<1x8x1xf32, #tpu.memory_space<vmem>>, %arg6: memref<1x8x1xf32, #tpu.memory_space<vmem>>, %arg7: memref<8x1xf32, #tpu.memory_space<vmem>>, %arg8: memref<8x1xf32, #tpu.memory_space<vmem>>, %arg9: memref<8x1xf32, #tpu.memory_space<vmem>>) attributes {dimension_semantics = [#tpu.dimension_semantics<parallel>, #tpu.dimension_semantics<arbitrary>], iteration_bounds = array<i64: 1, 1>, scalar_prefetch = 0 : i64, scratch_operands = 3 : i64, tpu.core_type = #tpu.core_type<tc>, window_params = [{transform_indices = @transform_0, window_bounds = array<i64: 8, 256>}, {transform_indices = @transform_1, window_bounds = array<i64: 8, 256>}, {transform_indices = @transform_2, window_bounds = array<i64: 1, 8, 1>}, {transform_indices = @transform_3, window_bounds = array<i64: 1, 8, 1>}, {transform_indices = @transform_4, window_bounds = array<i64: 1, 8, 1>}]} {
    %c0_i32 = arith.constant 0 : i32
    %0 = arith.cmpi eq, %arg1, %c0_i32 : i32
    %1 = arith.extui %0 : i1 to i32
    %c0_i32_0 = arith.constant 0 : i32
    %2 = arith.cmpi ne, %1, %c0_i32_0 : i32
    scf.if %2 {
      %cst_20 = arith.constant 0.000000e+00 : f32
      %26 = vector.broadcast %cst_20 : f32 to vector<8x1xf32>
      %c0_21 = arith.constant 0 : index
      %c0_22 = arith.constant 0 : index
      %27 = vector.load %arg7[%c0_21, %c0_22] : memref<8x1xf32, #tpu.memory_space<vmem>>, vector<8x1xf32>
      tpu.vector_store %arg7[%c0_21, %c0_22], %26 {strides = array<i32>} : memref<8x1xf32, #tpu.memory_space<vmem>>, vector<8x1xf32>,
      %cst_23 = arith.constant 0.000000e+00 : f32
      %28 = vector.broadcast %cst_23 : f32 to vector<8x1xf32>
      %c0_24 = arith.constant 0 : index
      %c0_25 = arith.constant 0 : index
      %29 = vector.load %arg8[%c0_24, %c0_25] : memref<8x1xf32, #tpu.memory_space<vmem>>, vector<8x1xf32>
      tpu.vector_store %arg8[%c0_24, %c0_25], %28 {strides = array<i32>} : memref<8x1xf32, #tpu.memory_space<vmem>>, vector<8x1xf32>,
      %cst_26 = arith.constant 0.000000e+00 : f32
      %30 = vector.broadcast %cst_26 : f32 to vector<8x1xf32>
      %c0_27 = arith.constant 0 : index
      %c0_28 = arith.constant 0 : index
      %31 = vector.load %arg9[%c0_27, %c0_28] : memref<8x1xf32, #tpu.memory_space<vmem>>, vector<8x1xf32>
      tpu.vector_store %arg9[%c0_27, %c0_28], %30 {strides = array<i32>} : memref<8x1xf32, #tpu.memory_space<vmem>>, vector<8x1xf32>,
    } else {
    }
    %c0 = arith.constant 0 : index
    %c0_1 = arith.constant 0 : index
    %3 = vector.load %arg2[%c0, %c0_1] : memref<8x256xf32, #tpu.memory_space<vmem>>, vector<8x256xf32>
    %c0_2 = arith.constant 0 : index
    %c0_3 = arith.constant 0 : index
    %4 = vector.load %arg3[%c0_2, %c0_3] : memref<8x256xf32, #tpu.memory_space<vmem>>, vector<8x256xf32>
    %c0_4 = arith.constant 0 : index
    %c0_5 = arith.constant 0 : index
    %5 = vector.load %arg7[%c0_4, %c0_5] : memref<8x1xf32, #tpu.memory_space<vmem>>, vector<8x1xf32>
    %6 = arith.mulf %3, %4 : vector<8x256xf32>
    %cst = arith.constant dense<0.000000e+00> : vector<8xf32>
    %7 = vector.multi_reduction <add>, %6, %cst [1] : vector<8x256xf32> to vector<8xf32>
    %8 = vector.shape_cast %7 : vector<8xf32> to vector<8x1xf32>
    %9 = arith.addf %5, %8 : vector<8x1xf32>
    %c0_6 = arith.constant 0 : index
    %c0_7 = arith.constant 0 : index
    %10 = vector.load %arg7[%c0_6, %c0_7] : memref<8x1xf32, #tpu.memory_space<vmem>>, vector<8x1xf32>
    tpu.vector_store %arg7[%c0_6, %c0_7], %9 {strides = array<i32>} : memref<8x1xf32, #tpu.memory_space<vmem>>, vector<8x1xf32>,
    %c0_8 = arith.constant 0 : index
    %c0_9 = arith.constant 0 : index
    %11 = vector.load %arg8[%c0_8, %c0_9] : memref<8x1xf32, #tpu.memory_space<vmem>>, vector<8x1xf32>
    %12 = arith.mulf %4, %4 : vector<8x256xf32>
    %cst_10 = arith.constant dense<0.000000e+00> : vector<8xf32>
    %13 = vector.multi_reduction <add>, %12, %cst_10 [1] : vector<8x256xf32> to vector<8xf32>
    %14 = vector.shape_cast %13 : vector<8xf32> to vector<8x1xf32>
    %15 = arith.addf %11, %14 : vector<8x1xf32>
    %c0_11 = arith.constant 0 : index
    %c0_12 = arith.constant 0 : index
    %16 = vector.load %arg8[%c0_11, %c0_12] : memref<8x1xf32, #tpu.memory_space<vmem>>, vector<8x1xf32>
    tpu.vector_store %arg8[%c0_11, %c0_12], %15 {strides = array<i32>} : memref<8x1xf32, #tpu.memory_space<vmem>>, vector<8x1xf32>,
    %c0_13 = arith.constant 0 : index
    %c0_14 = arith.constant 0 : index
    %17 = vector.load %arg9[%c0_13, %c0_14] : memref<8x1xf32, #tpu.memory_space<vmem>>, vector<8x1xf32>
    %18 = arith.mulf %3, %3 : vector<8x256xf32>
    %cst_15 = arith.constant dense<0.000000e+00> : vector<8xf32>
    %19 = vector.multi_reduction <add>, %18, %cst_15 [1] : vector<8x256xf32> to vector<8xf32>
    %20 = vector.shape_cast %19 : vector<8xf32> to vector<8x1xf32>
    %21 = arith.addf %17, %20 : vector<8x1xf32>
    %c0_16 = arith.constant 0 : index
    %c0_17 = arith.constant 0 : index
    %22 = vector.load %arg9[%c0_16, %c0_17] : memref<8x1xf32, #tpu.memory_space<vmem>>, vector<8x1xf32>
    tpu.vector_store %arg9[%c0_16, %c0_17], %21 {strides = array<i32>} : memref<8x1xf32, #tpu.memory_space<vmem>>, vector<8x1xf32>,
    %c0_i32_18 = arith.constant 0 : i32
    %23 = arith.cmpi eq, %arg1, %c0_i32_18 : i32
    %24 = arith.extui %23 : i1 to i32
    %c0_i32_19 = arith.constant 0 : i32
    %25 = arith.cmpi ne, %24, %c0_i32_19 : i32
    scf.if %25 {
      %c0_20 = arith.constant 0 : index
      %c0_21 = arith.constant 0 : index
      %26 = vector.load %arg7[%c0_20, %c0_21] : memref<8x1xf32, #tpu.memory_space<vmem>>, vector<8x1xf32>
      %c0_22 = arith.constant 0 : index
      %c0_23 = arith.constant 0 : index
      %c0_24 = arith.constant 0 : index
      %27 = vector.load %arg4[%c0_22, %c0_23, %c0_24] : memref<1x8x1xf32, #tpu.memory_space<vmem>>, vector<1x8x1xf32>
      %28 = vector.shape_cast %27 : vector<1x8x1xf32> to vector<8x1xf32>
      %29 = vector.shape_cast %26 : vector<8x1xf32> to vector<1x8x1xf32>
      tpu.vector_store %arg4[%c0_22, %c0_23, %c0_24], %29 {strides = array<i32>} : memref<1x8x1xf32, #tpu.memory_space<vmem>>, vector<1x8x1xf32>,
      %c0_25 = arith.constant 0 : index
      %c0_26 = arith.constant 0 : index
      %30 = vector.load %arg8[%c0_25, %c0_26] : memref<8x1xf32, #tpu.memory_space<vmem>>, vector<8x1xf32>
      %c0_27 = arith.constant 0 : index
      %c0_28 = arith.constant 0 : index
      %c0_29 = arith.constant 0 : index
      %31 = vector.load %arg5[%c0_27, %c0_28, %c0_29] : memref<1x8x1xf32, #tpu.memory_space<vmem>>, vector<1x8x1xf32>
      %32 = vector.shape_cast %31 : vector<1x8x1xf32> to vector<8x1xf32>
      %33 = vector.shape_cast %30 : vector<8x1xf32> to vector<1x8x1xf32>
      tpu.vector_store %arg5[%c0_27, %c0_28, %c0_29], %33 {strides = array<i32>} : memref<1x8x1xf32, #tpu.memory_space<vmem>>, vector<1x8x1xf32>,
      %c0_30 = arith.constant 0 : index
      %c0_31 = arith.constant 0 : index
      %34 = vector.load %arg9[%c0_30, %c0_31] : memref<8x1xf32, #tpu.memory_space<vmem>>, vector<8x1xf32>
      %c0_32 = arith.constant 0 : index
      %c0_33 = arith.constant 0 : index
      %c0_34 = arith.constant 0 : index
      %35 = vector.load %arg6[%c0_32, %c0_33, %c0_34] : memref<1x8x1xf32, #tpu.memory_space<vmem>>, vector<1x8x1xf32>
      %36 = vector.shape_cast %35 : vector<1x8x1xf32> to vector<8x1xf32>
      %37 = vector.shape_cast %34 : vector<8x1xf32> to vector<1x8x1xf32>
      tpu.vector_store %arg6[%c0_32, %c0_33, %c0_34], %37 {strides = array<i32>} : memref<1x8x1xf32, #tpu.memory_space<vmem>>, vector<1x8x1xf32>,
    } else {
    }
    return
  }
  func.func @transform_0(%arg0: i32, %arg1: i32) -> (i32, i32) {
    %c1_i32 = arith.constant 1 : i32
    %0 = arith.muli %arg0, %c1_i32 : i32
    %1 = arith.addi %0, %arg1 : i32
    %c0_i32 = arith.constant 0 : i32
    %c0_i32_0 = arith.constant 0 : i32
    return %c0_i32, %1 : i32, i32
  }
  func.func @transform_1(%arg0: i32, %arg1: i32) -> (i32, i32) {
    %c1_i32 = arith.constant 1 : i32
    %0 = arith.muli %arg0, %c1_i32 : i32
    %1 = arith.addi %0, %arg1 : i32
    %c0_i32 = arith.constant 0 : i32
    %c0_i32_0 = arith.constant 0 : i32
    return %c0_i32, %1 : i32, i32
  }
  func.func @transform_2(%arg0: i32, %arg1: i32) -> (i32, i32, i32) {
    %c0_i32 = arith.constant 0 : i32
    %c0_i32_0 = arith.constant 0 : i32
    %c0_i32_1 = arith.constant 0 : i32
    return %arg0, %c0_i32, %c0_i32_0 : i32, i32, i32
  }
  func.func @transform_3(%arg0: i32, %arg1: i32) -> (i32, i32, i32) {
    %c0_i32 = arith.constant 0 : i32
    %c0_i32_0 = arith.constant 0 : i32
    %c0_i32_1 = arith.constant 0 : i32
    return %arg0, %c0_i32, %c0_i32_0 : i32, i32, i32
  }
  func.func @transform_4(%arg0: i32, %arg1: i32) -> (i32, i32, i32) {
    %c0_i32 = arith.constant 0 : i32
    %c0_i32_0 = arith.constant 0 : i32
    %c0_i32_1 = arith.constant 0 : i32
    return %arg0, %c0_i32, %c0_i32_0 : i32, i32, i32
  }
}

</mosaic_0001>

<llo_original>
// kernel: tpu_custom_call.1
$region0: #{tpu_custom_call.1}
  #allocation0 [shape = 'u32[]', space=smem, size = 0x4, offset = 0x4, fixed_abs, tag = 'smem constant byte address 0x4 - core index']
  #allocation1 [shape = 'u32[144,128]{1,0:T(1,128)}', space=vmem, size = 0x12000, scoped, tag = 'internal scratch']
  #allocation2 [shape = 'f32[8,1]{1,0:T(8,128)}', space=vmem, size = 0x1000, scoped, tag = 'scratch operand']
  #allocation3 [shape = 'f32[8,1]{1,0:T(8,128)}', space=vmem, size = 0x1000, scoped, tag = 'scratch operand']
  #allocation4 [shape = 'f32[8,1]{1,0:T(8,128)}', space=vmem, size = 0x1000, scoped, tag = 'scratch operand']
  %s0 = inlined_call_operand.hbm [shape: f32[8,256], index: 0, kind: input, shape index: {}]
  %s1 = inlined_call_operand.hbm [shape: f32[8,256], index: 1, kind: input, shape index: {}]
  %s2 = inlined_call_operand.vmem [shape: f32[1,8,1], index: 2, kind: output, shape index: {0}]
  %s3 = inlined_call_operand.vmem [shape: f32[1,8,1], index: 3, kind: output, shape index: {1}]
  %s4 = inlined_call_operand.vmem [shape: f32[1,8,1], index: 4, kind: output, shape index: {2}]
  %5 = xla_tuple %s2, %s3, %s4
  %s6 = sld [smem:[#allocation0]]
  $region50: #{tpu_custom_call.1} parent=0
    _
  %s8 = ssub.s32 1, %s6
  %s9 = scalar_select 0, %s8, %s6
  $region1: #{tpu_custom_call.1} parent=0
    #allocation5 [shape = 'u8[8192]{0}', space=vmem, size = 0x2000, scoped, tag = 'input window, operand 0, single buffered']
    #allocation6 [shape = 's32[1]{0}', space=sflag, size = 0x4, scoped, tag = 'scoped memory for tpu_custom_call.1']
    #allocation7 [shape = 'u8[8192]{0}', space=vmem, size = 0x2000, scoped, tag = 'input window, operand 1, single buffered']
    #allocation8 [shape = 's32[1]{0}', space=sflag, size = 0x4, scoped, tag = 'scoped memory for tpu_custom_call.1']
    %10 = vsyncpa [#allocation6], 0
    %11 = vsyncpa [#allocation8], 0
    // Predicated region
    $region2: #{tpu_custom_call.1} parent=1 // pred_check
      _
    $region3: #{tpu_custom_call.1} parent=1 // pred_check_branch
      %13 = sbr.rel (0) target = $region5
    $region4: #{tpu_custom_call.1} parent=1 // pred_region
      %s14 = sadd.s32 0, 0
      %s15 = smul.u32 2, %s14
      %s17 = ssub.s32 256, 256
      %18 = vsyncadd [#allocation6], %s17
      %s19 = smul.addr %s15, 128
      %s20 = scalar_lea.hbm %s0, %s19
      %s22 = sshll.u32 [#allocation5], 4
      %s23 = int_to_ptr.vmem [resolvable:$true] %s22
      %25 = dma.hbm_to_vmem [thread:$0]  %s20, 256, %s23, [#allocation6]
    $region5: #{tpu_custom_call.1} parent=1 // pred_fallthru
      _
    // Predicated region
    $region6: #{tpu_custom_call.1} parent=1 // pred_check
      _
    $region7: #{tpu_custom_call.1} parent=1 // pred_check_branch
      %27 = sbr.rel (0) target = $region9
    $region8: #{tpu_custom_call.1} parent=1 // pred_region
      %s28 = sadd.s32 0, 0
      %s29 = smul.u32 2, %s28
      %s31 = ssub.s32 256, 256
      %32 = vsyncadd [#allocation8], %s31
      %s33 = smul.addr %s29, 128
      %s34 = scalar_lea.hbm %s1, %s33
      %s36 = sshll.u32 [#allocation7], 4
      %s37 = int_to_ptr.vmem [resolvable:$true] %s36
      %39 = dma.hbm_to_vmem [thread:$0]  %s34, 256, %s37, [#allocation8]
    $region9: #{tpu_custom_call.1} parent=1 // pred_fallthru
      _
    // Predicated region
    $region10: #{tpu_custom_call.1} parent=1 // pred_check
      _
    $region11: #{tpu_custom_call.1} parent=1 // pred_check_branch
      %41 = sbr.rel (0) target = $region13
    $region12: #{tpu_custom_call.1} parent=1 // pred_region
      %42 = dma.done [#allocation6], 256
    $region13: #{tpu_custom_call.1} parent=1 // pred_fallthru
      _
    // Predicated region
    $region14: #{tpu_custom_call.1} parent=1 // pred_check
      _
    $region15: #{tpu_custom_call.1} parent=1 // pred_check_branch
      %44 = sbr.rel (0) target = $region17
    $region16: #{tpu_custom_call.1} parent=1 // pred_region
      %45 = dma.done [#allocation8], 256
    $region17: #{tpu_custom_call.1} parent=1 // pred_fallthru
      _
    %s46 = sadd.s32 0, 0
    %s47 = smul.u32 2, %s46
    %s48 = sadd.s32 0, 0
    %s49 = smul.u32 2, %s48
    %p50 = scmp.eq.s32.totalorder 0, 0
    // Predicated region
    $region18: #{tpu_custom_call.1} parent=1 // pred_check
      %p51 = pneg %p50
    $region19: #{tpu_custom_call.1} parent=1 // pred_check_branch
      %53 = sbr.rel (%p51) target = $region21
    $region20: #{tpu_custom_call.1} parent=1 // pred_region
      %vm54 = vcmask 7168
      %55 = vst.msk [vmem:[#allocation2] sm:$0xff] %vm54, 0.0
      %56 = vst.msk [vmem:[#allocation3] sm:$0xff] %vm54, 0.0
      %57 = vst.msk [vmem:[#allocation4] sm:$0xff] %vm54, 0.0
    $region21: #{tpu_custom_call.1} parent=1 // pred_fallthru
      _
    %v58 = vld [vmem:[#allocation5] sm:$0xff]
    %v59 = vld [vmem:[#allocation5 + $0x8] sm:$0xff]
    %v60 = vld [vmem:[#allocation7] sm:$0xff]
    %v61 = vld [vmem:[#allocation7 + $0x8] sm:$0xff]
    %v62 = vld [vmem:[#allocation2] sm:$0xff]
    %v63 = vmul.f32 %v58, %v60
    %v64 = vmul.f32 %v59, %v61
    %v65 = vadd.f32 %v63, %v64
    %66 = vadd.xlane.f32.xlu0 %v65
    %v67 = vpop.xlane.xlu0 %66
    %v68 = vadd.f32 %v62, %v67
    %vm69 = vcmask 7168
    %70 = vst.msk [vmem:[#allocation2] sm:$0xff] %vm69, %v68
    %v71 = vld [vmem:[#allocation3] sm:$0xff]
    %v72 = vmul.f32 %v60, %v60
    %v73 = vmul.f32 %v61, %v61
    %v74 = vadd.f32 %v72, %v73
    %75 = vadd.xlane.f32.xlu0 %v74
    %v76 = vpop.xlane.xlu0 %75
    %v77 = vadd.f32 %v71, %v76
    %78 = vst.msk [vmem:[#allocation3] sm:$0xff] %vm69, %v77
    %v79 = vld [vmem:[#allocation4] sm:$0xff]
    %v80 = vmul.f32 %v58, %v58
    %v81 = vmul.f32 %v59, %v59
    %v82 = vadd.f32 %v80, %v81
    %83 = vadd.xlane.f32.xlu0 %v82
    %v84 = vpop.xlane.xlu0 %83
    %v85 = vadd.f32 %v79, %v84
    %86 = vst.msk [vmem:[#allocation4] sm:$0xff] %vm69, %v85
    // Predicated region
    $region22: #{tpu_custom_call.1} parent=1 // pred_check
      %p87 = pneg %p50
    $region23: #{tpu_custom_call.1} parent=1 // pred_check_branch
      %89 = sbr.rel (%p87) target = $region25
    $region24: #{tpu_custom_call.1} parent=1 // pred_region
      %v90 = vld [vmem:[#allocation2] sm:$0xff]
      %91 = vst.msk [vmem:[%s2] sm:$0xff] %vm69, %v90
      %v92 = vld [vmem:[#allocation3] sm:$0xff]
      %93 = vst.msk [vmem:[%s3] sm:$0xff] %vm69, %v92
      %v94 = vld [vmem:[#allocation4] sm:$0xff]
      %95 = vst.msk [vmem:[%s4] sm:$0xff] %vm69, %v94
    $region25: #{tpu_custom_call.1} parent=1 // pred_fallthru
      _
    // Predicated region
    $region26: #{tpu_custom_call.1} parent=1 // pred_check
      _
    $region27: #{tpu_custom_call.1} parent=1 // pred_check_branch
      %97 = sbr.rel (0) target = $region29
    $region28: #{tpu_custom_call.1} parent=1 // pred_region
      _
    $region29: #{tpu_custom_call.1} parent=1 // pred_fallthru
      _
    // Predicated region
    $region30: #{tpu_custom_call.1} parent=1 // pred_check
      _
    $region31: #{tpu_custom_call.1} parent=1 // pred_check_branch
      %99 = sbr.rel (0) target = $region33
    $region32: #{tpu_custom_call.1} parent=1 // pred_region
      _
    $region33: #{tpu_custom_call.1} parent=1 // pred_fallthru
      _
    // Predicated region
    $region34: #{tpu_custom_call.1} parent=1 // pred_check
      _
    $region35: #{tpu_custom_call.1} parent=1 // pred_check_branch
      %101 = sbr.rel (0) target = $region37
    $region36: #{tpu_custom_call.1} parent=1 // pred_region
      _
    $region37: #{tpu_custom_call.1} parent=1 // pred_fallthru
      _
    // Predicated region
    $region38: #{tpu_custom_call.1} parent=1 // pred_check
      _
    $region39: #{tpu_custom_call.1} parent=1 // pred_check_branch
      %103 = sbr.rel (0) target = $region41
    $region40: #{tpu_custom_call.1} parent=1 // pred_region
      _
    $region41: #{tpu_custom_call.1} parent=1 // pred_fallthru
      _
    // Predicated region
    $region42: #{tpu_custom_call.1} parent=1 // pred_check
      _
    $region43: #{tpu_custom_call.1} parent=1 // pred_check_branch
      %105 = sbr.rel (0) target = $region45
    $region44: #{tpu_custom_call.1} parent=1 // pred_region
      _
    $region45: #{tpu_custom_call.1} parent=1 // pred_fallthru
      _
    // Predicated region
    $region46: #{tpu_custom_call.1} parent=1 // pred_check
      _
    $region47: #{tpu_custom_call.1} parent=1 // pred_check_branch
      %107 = sbr.rel (0) target = $region49
    $region48: #{tpu_custom_call.1} parent=1 // pred_region
      _
    $region49: #{tpu_custom_call.1} parent=1 // pred_fallthru
      _
    %108 = vsyncpa [#allocation6], 1
    %109 = vsyncpa [#allocation8], 1

</llo_original>
